<compile_context>
chip_gen: v5e
topology: v5e:2x2
jax: 0.10.0
libtpu: 0.0.40
codegen_flags: <defaults>
</compile_context>

<pallas_src>
import functools

import jax
import jax.numpy as jnp
from jax.experimental import pallas as pl
from jax.experimental.pallas import tpu as pltpu

_LANES = 128


def _add_kernel(a_ref, b_ref, o_ref):
    o_ref[...] = a_ref[...] + b_ref[...]


def _sublane_quantum(dtype):
    # Packed min tiles: f32 -> (8,128), bf16 -> (16,128), int8/fp8 -> (32,128).
    itemsize = jnp.dtype(dtype).itemsize
    return 8 * max(1, 4 // itemsize)


@functools.lru_cache(maxsize=None)
def _chip_params():
    """(num_tensorcores, target_block_bytes, vmem_limit_bytes) for the local chip."""
    kind = ""
    try:
        kind = (jax.devices()[0].device_kind or "").lower()
    except Exception:
        pass
    vmem_physical = None
    try:
        vmem_physical = int(pltpu.get_tpu_info().vmem_capacity_bytes)
    except Exception:
        pass
    if "v7" in kind:
        # v7x: 2 TensorCores per chip, 64 MiB physical VMEM (32 MiB scoped default).
        num_cores, target_block_bytes, vmem_limit = 2, 2 * 1024 * 1024, 32 * 1024 * 1024
    else:
        # v5e / v6e: 1 TensorCore, 128 MiB physical VMEM.
        num_cores, target_block_bytes, vmem_limit = 1, 4 * 1024 * 1024, 64 * 1024 * 1024
    if vmem_physical:
        vmem_limit = min(vmem_limit, vmem_physical // 2)
    return num_cores, target_block_bytes, vmem_limit


def _pick_tile_rows(rows, itemsize, sublane_q, num_cores, target_block_bytes):
    """Rows per block: big enough to amortize per-step overhead, but >= 2 blocks/core on v7x."""
    bytes_per_row = _LANES * itemsize
    max_rows = max(sublane_q,
                   (target_block_bytes // bytes_per_row) // sublane_q * sublane_q)
    if num_cores >= 2:
        # At least 2 blocks per TensorCore: both cores busy, and each core can
        # overlap the next block's load DMA with the current block's store.
        min_blocks = 2 * num_cores
        per_block = pl.cdiv(rows, min_blocks)
        per_block = max(sublane_q, per_block // sublane_q * sublane_q)
        tile = min(max_rows, per_block)
    else:
        # Single TensorCore: the grid is a serial loop -> take the biggest legal block.
        tile = min(max_rows, rows)
    tile = min(tile, rows)
    tile = max(sublane_q, tile - tile % sublane_q)
    return tile


def pallas_add(a, b):
    """x40 = x39 + x27 (elementwise residual add), single HBM pass."""
    assert a.shape == b.shape and a.dtype == b.dtype
    orig_shape = a.shape
    total = a.size
    dtype = jnp.dtype(a.dtype)
    itemsize = dtype.itemsize
    sublane_q = _sublane_quantum(dtype)
    quantum = sublane_q * _LANES

    if total == 0 or total % quantum != 0:
        # Ragged sizes (never the real 1x32x112x112 shape): a plain XLA add is
        # already a single HBM pass; pad/slice plumbing would only add passes.
        return a + b

    rows = total // _LANES
    a2 = a.reshape(rows, _LANES)   # contiguous reshape: layout-only, no extra HBM traffic
    b2 = b.reshape(rows, _LANES)

    num_cores, target_block_bytes, vmem_limit = _chip_params()
    tile_rows = _pick_tile_rows(rows, itemsize, sublane_q, num_cores, target_block_bytes)
    grid = (pl.cdiv(rows, tile_rows),)   # partial last block (if any) is masked by Pallas

    out2 = pl.pallas_call(
        _add_kernel,
        out_shape=jax.ShapeDtypeStruct((rows, _LANES), dtype),
        grid=grid,
        in_specs=[
            pl.BlockSpec((tile_rows, _LANES), lambda i: (i, 0)),
            pl.BlockSpec((tile_rows, _LANES), lambda i: (i, 0)),
        ],
        out_specs=pl.BlockSpec((tile_rows, _LANES), lambda i: (i, 0)),
        input_output_aliases={0: 0},   # residual add may safely overwrite operand 0
        cost_estimate=pl.CostEstimate(
            flops=total, transcendentals=0, bytes_accessed=3 * total * itemsize),
        compiler_params=pltpu.CompilerParams(
            dimension_semantics=("parallel",),
            vmem_limit_bytes=vmem_limit,
        ),
    )(a2, b2)

    return out2.reshape(orig_shape)


if __name__ == "__main__":
    key = jax.random.PRNGKey(0)
    k1, k2, k3, k4, k5, k6 = jax.random.split(key, 6)

    # Donate operand 0 at the jit boundary so the pallas-level alias is usable.
    add_fn = jax.jit(pallas_add, donate_argnums=(0,))

    # Small NCHW shape consistent with the module's (1, 32, 112, 112) residual add.
    shape = (1, 32, 16, 16)
    x39 = jax.random.normal(k1, shape, dtype=jnp.float32)
    x27 = jax.random.normal(k2, shape, dtype=jnp.float32)
    ref = x39 + x27                       # compute before the call: x39 is donated
    out = add_fn(x39, x27)
    jax.block_until_ready(out)
    assert out.shape == ref.shape and out.dtype == ref.dtype
    assert jnp.allclose(out, ref, atol=1e-6, rtol=1e-6)

    # bf16 path (common inference dtype): exercises the 16-row sublane quantum.
    a_bf = jax.random.normal(k3, shape, dtype=jnp.bfloat16)
    b_bf = jax.random.normal(k4, shape, dtype=jnp.bfloat16)
    ref_bf = (a_bf + b_bf).astype(jnp.float32)
    out_bf = add_fn(a_bf, b_bf)
    jax.block_until_ready(out_bf)
    assert jnp.allclose(out_bf.astype(jnp.float32), ref_bf, atol=1e-2, rtol=1e-2)

    # Ragged shape (size not a multiple of the sublane*lane quantum): single-pass
    # XLA fallback, no pad/slice extra passes.
    odd_shape = (1, 3, 5, 7)
    a_odd = jax.random.normal(k5, odd_shape, dtype=jnp.float32)
    b_odd = jax.random.normal(k6, odd_shape, dtype=jnp.float32)
    ref_odd = a_odd + b_odd
    out_odd = add_fn(a_odd, b_odd)
    jax.block_until_ready(out_odd)
    assert jnp.allclose(out_odd, ref_odd, atol=1e-6, rtol=1e-6)

    print("KERNEL_OK")
</pallas_src>

<mosaic_0001>
module attributes {stable_mosaic.version = 11 : i64} {
  func.func @_add_kernel(%arg0: i32, %arg1: memref<64x128xf32, #tpu.memory_space<vmem>>, %arg2: memref<64x128xf32, #tpu.memory_space<vmem>>, %arg3: memref<64x128xf32, #tpu.memory_space<vmem>>) attributes {dimension_semantics = [#tpu.dimension_semantics<parallel>], iteration_bounds = array<i64: 1>, scalar_prefetch = 0 : i64, scratch_operands = 0 : i64, tpu.core_type = #tpu.core_type<tc>, window_params = [{transform_indices = @transform_0, window_bounds = array<i64: 64, 128>}, {transform_indices = @transform_1, window_bounds = array<i64: 64, 128>}, {transform_indices = @transform_2, window_bounds = array<i64: 64, 128>}]} {
    %c0 = arith.constant 0 : index
    %c0_0 = arith.constant 0 : index
    %0 = vector.load %arg1[%c0, %c0_0] : memref<64x128xf32, #tpu.memory_space<vmem>>, vector<64x128xf32>
    %c0_1 = arith.constant 0 : index
    %c0_2 = arith.constant 0 : index
    %1 = vector.load %arg2[%c0_1, %c0_2] : memref<64x128xf32, #tpu.memory_space<vmem>>, vector<64x128xf32>
    %2 = arith.addf %0, %1 : vector<64x128xf32>
    %c0_3 = arith.constant 0 : index
    %c0_4 = arith.constant 0 : index
    %3 = vector.load %arg3[%c0_3, %c0_4] : memref<64x128xf32, #tpu.memory_space<vmem>>, vector<64x128xf32>
    tpu.vector_store %arg3[%c0_3, %c0_4], %2 {strides = array<i32>} : memref<64x128xf32, #tpu.memory_space<vmem>>, vector<64x128xf32>,
    return
  }
  func.func @transform_0(%arg0: i32) -> (i32, i32) {
    %c0_i32 = arith.constant 0 : i32
    %c0_i32_0 = arith.constant 0 : i32
    return %arg0, %c0_i32 : i32, i32
  }
  func.func @transform_1(%arg0: i32) -> (i32, i32) {
    %c0_i32 = arith.constant 0 : i32
    %c0_i32_0 = arith.constant 0 : i32
    return %arg0, %c0_i32 : i32, i32
  }
  func.func @transform_2(%arg0: i32) -> (i32, i32) {
    %c0_i32 = arith.constant 0 : i32
    %c0_i32_0 = arith.constant 0 : i32
    return %arg0, %c0_i32 : i32, i32
  }
}

</mosaic_0001>

<llo_original>
// kernel: pallas_add.1
$region0: #{pallas_add.1}
  #allocation0 [shape = 'u32[]', space=smem, size = 0x4, offset = 0x4, fixed_abs, tag = 'smem constant byte address 0x4 - core index']
  #allocation1 [shape = 'u32[72,128]{1,0:T(1,128)}', space=vmem, size = 0x9000, scoped, tag = 'internal scratch']
  %s0 = inlined_call_operand.vmem [shape: f32[64,128], index: 0, kind: input, shape index: {}, may-alias: {0,2}]
  %s1 = inlined_call_operand.vmem [shape: f32[64,128], index: 1, kind: input, shape index: {}]
  %s2 = inlined_call_operand.vmem [shape: f32[64,128], index: 2, kind: output, shape index: {}, may-alias: {0,2}]
  %s3 = sld [smem:[#allocation0]]
  $region18: #{pallas_add.1} parent=0
    _
  %s5 = ssub.s32 1, %s3
  %s6 = scalar_select 0, %s5, %s3
  // Predicated region
  $region2: #{pallas_add.1} parent=0 // pred_check
    _
  $region3: #{pallas_add.1} parent=0 // pred_check_branch
    %8 = sbr.rel (0) target = $region5
  $region4: #{pallas_add.1} parent=0 // pred_region
    _
  $region5: #{pallas_add.1} parent=0 // pred_fallthru
    _
  // Predicated region
  $region6: #{pallas_add.1} parent=0 // pred_check
    _
  $region7: #{pallas_add.1} parent=0 // pred_check_branch
    %10 = sbr.rel (0) target = $region9
  $region8: #{pallas_add.1} parent=0 // pred_region
    _
  $region9: #{pallas_add.1} parent=0 // pred_fallthru
    _
  %v11 = vld [vmem:[%s0] sm:$0xff]
  %v12 = vld [vmem:[%s0 + $0x8] sm:$0xff]
  %v13 = vld [vmem:[%s0 + $0x10] sm:$0xff]
  %v14 = vld [vmem:[%s0 + $0x18] sm:$0xff]
  %v15 = vld [vmem:[%s0 + $0x20] sm:$0xff]
  %v16 = vld [vmem:[%s0 + $0x28] sm:$0xff]
  %v17 = vld [vmem:[%s0 + $0x30] sm:$0xff]
  %v18 = vld [vmem:[%s0 + $0x38] sm:$0xff]
  %v19 = vld [vmem:[%s1] sm:$0xff]
  %v20 = vld [vmem:[%s1 + $0x8] sm:$0xff]
  %v21 = vld [vmem:[%s1 + $0x10] sm:$0xff]
  %v22 = vld [vmem:[%s1 + $0x18] sm:$0xff]
  %v23 = vld [vmem:[%s1 + $0x20] sm:$0xff]
  %v24 = vld [vmem:[%s1 + $0x28] sm:$0xff]
  %v25 = vld [vmem:[%s1 + $0x30] sm:$0xff]
  %v26 = vld [vmem:[%s1 + $0x38] sm:$0xff]
  %v27 = vadd.f32 %v11, %v19
  %v28 = vadd.f32 %v12, %v20
  %v29 = vadd.f32 %v13, %v21
  %v30 = vadd.f32 %v14, %v22
  %v31 = vadd.f32 %v15, %v23
  %v32 = vadd.f32 %v16, %v24
  %v33 = vadd.f32 %v17, %v25
  %v34 = vadd.f32 %v18, %v26
  %35 = vst [vmem:[%s2] sm:$0xff] %v27
  %36 = vst [vmem:[%s2 + $0x8] sm:$0xff] %v28
  %37 = vst [vmem:[%s2 + $0x10] sm:$0xff] %v29
  %38 = vst [vmem:[%s2 + $0x18] sm:$0xff] %v30
  %39 = vst [vmem:[%s2 + $0x20] sm:$0xff] %v31
  %40 = vst [vmem:[%s2 + $0x28] sm:$0xff] %v32
  %41 = vst [vmem:[%s2 + $0x30] sm:$0xff] %v33
  %42 = vst [vmem:[%s2 + $0x38] sm:$0xff] %v34
  // Predicated region
  $region10: #{pallas_add.1} parent=0 // pred_check
    _
  $region11: #{pallas_add.1} parent=0 // pred_check_branch
    %44 = sbr.rel (0) target = $region13
  $region12: #{pallas_add.1} parent=0 // pred_region
    _
  $region13: #{pallas_add.1} parent=0 // pred_fallthru
    _
  // Predicated region
  $region14: #{pallas_add.1} parent=0 // pred_check
    _
  $region15: #{pallas_add.1} parent=0 // pred_check_branch
    %46 = sbr.rel (0) target = $region17
  $region16: #{pallas_add.1} parent=0 // pred_region
    _
  $region17: #{pallas_add.1} parent=0 // pred_fallthru
    _

</llo_original>
